<compile_context>
chip_gen: v7x
topology: tpu7x:2x2x1
jax: 0.10.0
libtpu: 0.0.40
codegen_flags: <defaults>
</compile_context>

<pallas_src>
import functools
import math

import jax
import jax.numpy as jnp
from jax.experimental import pallas as pl
from jax.experimental.pallas import tpu as pltpu


def _patch_embed_kernel(xf_ref, w_ref, s_ref, b_ref, p_ref, o_ref, *, eps, use_norm):
    # xf_ref: (tile_m, R*K)  R patch tokens packed per row (lane-dense input)
    # w_ref : (R*K, R*E)     block-diagonal projection weight
    # s_ref : (R*E, R)       group-average matrix (entries 1/E, block diagonal)
    # b_ref : (R, R*E)       group-broadcast matrix (entries 1, block diagonal)
    # p_ref : (3, R*E)       rows = [conv bias, ln gamma, ln beta], tiled R times (f32)
    # o_ref : (tile_m, R*E)  lane-dense output slab (R tokens per row)
    x = xf_ref[...]                      # native dtype (no f32 upcast of operands)
    w = w_ref[...]
    y = jnp.dot(x, w, preferred_element_type=jnp.float32)   # f32 accumulation
    p = p_ref[...]                       # (3, R*E) f32
    y = y + p[0:1, :]                    # conv bias (shifts mean/var, applied pre-LN)
    if use_norm:
        s = s_ref[...]
        bc = b_ref[...]
        # one-pass per-token stats via tiny matmuls (MXU has slack; no XLU reshapes)
        mean_g = jnp.dot(y, s, preferred_element_type=jnp.float32)       # (tile_m, R)
        ex2_g = jnp.dot(y * y, s, preferred_element_type=jnp.float32)    # (tile_m, R)
        var_g = jnp.maximum(ex2_g - mean_g * mean_g, 0.0)
        rstd_g = jax.lax.rsqrt(var_g + eps)
        mean_b = jnp.dot(mean_g, bc, preferred_element_type=jnp.float32)  # (tile_m, R*E)
        rstd_b = jnp.dot(rstd_g, bc, preferred_element_type=jnp.float32)  # (tile_m, R*E)
        y = (y - mean_b) * rstd_b
        y = y * p[1:2, :] + p[2:3, :]
    o_ref[...] = y.astype(o_ref.dtype)


def patch_embed_forward(x, conv_w, conv_b, ln_gamma, ln_beta, *,
                        patch_size=(4, 4), use_norm=True, eps=1e-5,
                        tile_tokens=4096, vmem_budget_bytes=24 * 1024 * 1024):
    """x: (B, C, H, W) NCHW.  Returns ((B, Ho*Wo, E), (Ho, Wo))."""
    B, C, H, W = x.shape
    ph, pw = patch_size
    E = conv_w.shape[0]
    if ln_gamma is None:
        ln_gamma = jnp.ones((E,), jnp.float32)
    if ln_beta is None:
        ln_beta = jnp.zeros((E,), jnp.float32)

    # Same padding semantics as the PyTorch module (pad right / bottom).
    if W % pw != 0:
        x = jnp.pad(x, ((0, 0), (0, 0), (0, 0), (0, pw - W % pw)))
    if H % ph != 0:
        x = jnp.pad(x, ((0, 0), (0, 0), (0, ph - H % ph), (0, 0)))
    _, _, Hp, Wp = x.shape
    Ho, Wo = Hp // ph, Wp // pw
    L = Ho * Wo
    N = B * L
    K = C * ph * pw

    # Patch extraction: (B,C,Hp,Wp) -> (N, K), inner order (C, ph, pw) matches
    # PyTorch Conv2d weight flattening.
    # TODO(synk): this transpose is one extra XLA pass over the input; fusing the
    # NCHW channel gather into the kernel needs cross-lane relayouts that Mosaic
    # handles poorly, so it is intentionally left to XLA.
    patches = x.reshape(B, C, Ho, ph, Wo, pw)
    patches = patches.transpose(0, 2, 4, 1, 3, 5).reshape(N, K)

    # Fold R tokens per row so the output last dim is a multiple of 128 (lane-dense).
    R = math.lcm(E, 128) // E
    if R > 8:            # pathological embed dims: fall back to no packing
        R = 1
    Nf = -(-N // R)

    # Tile sizing: as many tokens per grid step as the VMEM budget allows
    # (double-buffered in/out blocks + resident weights), floor at 8 rows.
    in_b = jnp.dtype(x.dtype).itemsize
    w_b = jnp.dtype(conv_w.dtype).itemsize
    resident = 2 * (R * K * R * E * w_b        # block-diag weight
                    + R * E * R * 4            # group-average matrix
                    + R * R * E * 4            # group-broadcast matrix
                    + 3 * R * E * 4)           # fused bias/gamma/beta
    tile_m = max(8, (tile_tokens // R // 8) * 8)
    tile_m = min(tile_m, -(-Nf // 8) * 8)      # don't exceed the problem size
    while tile_m > 8:
        need = 2 * (tile_m * R * K * in_b + tile_m * R * E * in_b) + resident
        if need <= vmem_budget_bytes:
            break
        tile_m //= 2
    tile_m = max(8, (tile_m // 8) * 8)
    num_blocks = -(-Nf // tile_m)
    Nf_pad = num_blocks * tile_m
    N_pad = Nf_pad * R

    if N_pad != N:                      # ragged tail: pad rows (sliced away below)
        patches = jnp.pad(patches, ((0, N_pad - N), (0, 0)))
    xf = patches.reshape(Nf_pad, R * K)        # free reshape (rows contiguous)

    # Fold weights / params for the R-token packing.
    w_mat = conv_w.reshape(E, K).T                                   # (K, E)
    w_bd = jnp.kron(jnp.eye(R, dtype=w_mat.dtype), w_mat)            # (R*K, R*E)
    s_mat = jnp.kron(jnp.eye(R, dtype=jnp.float32),
                     jnp.full((E, 1), 1.0 / E, jnp.float32))         # (R*E, R)
    b_mat = jnp.kron(jnp.eye(R, dtype=jnp.float32),
                     jnp.ones((1, E), jnp.float32))                  # (R, R*E)
    params = jnp.stack([jnp.tile(conv_b.astype(jnp.float32), R),
                        jnp.tile(ln_gamma.astype(jnp.float32), R),
                        jnp.tile(ln_beta.astype(jnp.float32), R)])   # (3, R*E)

    need = 2 * (tile_m * R * K * in_b + tile_m * R * E * in_b) + resident
    vmem_limit = int(min(max(2 * need, 16 << 20), 64 << 20))   # v7x-safe (64 MiB phys)

    kernel = functools.partial(_patch_embed_kernel, eps=eps, use_norm=use_norm)
    out = pl.pallas_call(
        kernel,
        out_shape=jax.ShapeDtypeStruct((Nf_pad, R * E), x.dtype),
        grid_spec=pltpu.PrefetchScalarGridSpec(
            num_scalar_prefetch=0,
            grid=(num_blocks,),
            in_specs=[
                pl.BlockSpec((tile_m, R * K), lambda i: (i, 0)),   # folded patches
                pl.BlockSpec((R * K, R * E), lambda i: (0, 0)),    # weight (resident)
                pl.BlockSpec((R * E, R), lambda i: (0, 0)),        # group average
                pl.BlockSpec((R, R * E), lambda i: (0, 0)),        # group broadcast
                pl.BlockSpec((3, R * E), lambda i: (0, 0)),        # bias/gamma/beta
            ],
            out_specs=pl.BlockSpec((tile_m, R * E), lambda i: (i, 0)),
        ),
        compiler_params=pltpu.CompilerParams(
            dimension_semantics=("parallel",),
            vmem_limit_bytes=vmem_limit),
    )(xf, w_bd, s_mat, b_mat, params)

    # Unfold: slab row t holds tokens R*t .. R*t+R-1, contiguous -> free reshape.
    out = out.reshape(N_pad, E)[:N].reshape(B, L, E)
    return out, (Ho, Wo)


def _reference(x, conv_w, conv_b, ln_gamma, ln_beta, patch_size, use_norm, eps=1e-5):
    y = jax.lax.conv_general_dilated(
        x.astype(jnp.float32), conv_w.astype(jnp.float32),
        window_strides=patch_size, padding="VALID",
        dimension_numbers=("NCHW", "OIHW", "NCHW"))
    y = y + conv_b.reshape(1, -1, 1, 1)
    B, E, Ho, Wo = y.shape
    y = y.reshape(B, E, Ho * Wo).transpose(0, 2, 1)           # (B, L, E)
    if use_norm:
        mean = jnp.mean(y, -1, keepdims=True)
        var = jnp.mean((y - mean) ** 2, -1, keepdims=True)
        y = (y - mean) / jnp.sqrt(var + eps) * ln_gamma + ln_beta
    return y, (Ho, Wo)


if __name__ == "__main__":
    # Small shapes consistent with the module: img 16x16, patch 4, 4 in-chans,
    # embed_dim 32  ->  Ho=Wo=4, num_patches=16 per image.
    B, C, H, W = 2, 4, 16, 16
    patch = (4, 4)
    E = 32

    key = jax.random.PRNGKey(0)
    k1, k2, k3 = jax.random.split(key, 3)
    x = jax.random.normal(k1, (B, C, H, W), dtype=jnp.float32)
    conv_w = jax.random.normal(k2, (E, C, patch[0], patch[1]), dtype=jnp.float32) * 0.05
    conv_b = jax.random.normal(k3, (E,), dtype=jnp.float32) * 0.05
    ln_gamma = jnp.ones((E,), dtype=jnp.float32)
    ln_beta = jnp.zeros((E,), dtype=jnp.float32)

    out, out_size = patch_embed_forward(
        x, conv_w, conv_b, ln_gamma, ln_beta,
        patch_size=patch, use_norm=True)
    out = jax.block_until_ready(out)

    ref, ref_size = _reference(x, conv_w, conv_b, ln_gamma, ln_beta, patch, True)
    assert out.shape == (B, (H // patch[0]) * (W // patch[1]), E), out.shape
    assert out_size == ref_size
    err = float(jnp.max(jnp.abs(out - ref)))
    assert jnp.allclose(out, ref, atol=2e-4, rtol=2e-4), err

    print("KERNEL_OK")
</pallas_src>

<mosaic_0001>
module attributes {stable_mosaic.version = 11 : i64} {
  func.func @_patch_embed_kernel(%arg0: i32, %arg1: memref<8x256xf32, #tpu.memory_space<vmem>>, %arg2: memref<256x128xf32, #tpu.memory_space<vmem>>, %arg3: memref<128x4xf32, #tpu.memory_space<vmem>>, %arg4: memref<4x128xf32, #tpu.memory_space<vmem>>, %arg5: memref<3x128xf32, #tpu.memory_space<vmem>>, %arg6: memref<8x128xf32, #tpu.memory_space<vmem>>) attributes {dimension_semantics = [#tpu.dimension_semantics<parallel>], iteration_bounds = array<i64: 1>, scalar_prefetch = 0 : i64, scratch_operands = 0 : i64, tpu.core_type = #tpu.core_type<tc>, window_params = [{transform_indices = @transform_0, window_bounds = array<i64: 8, 256>}, {pipeline_mode = #tpu.pipeline_mode<synchronous>, transform_indices = @transform_1, window_bounds = array<i64: 256, 128>}, {pipeline_mode = #tpu.pipeline_mode<synchronous>, transform_indices = @transform_2, window_bounds = array<i64: 128, 4>}, {pipeline_mode = #tpu.pipeline_mode<synchronous>, transform_indices = @transform_3, window_bounds = array<i64: 4, 128>}, {pipeline_mode = #tpu.pipeline_mode<synchronous>, transform_indices = @transform_4, window_bounds = array<i64: 3, 128>}, {transform_indices = @transform_5, window_bounds = array<i64: 8, 128>}]} {
    %c0 = arith.constant 0 : index
    %c0_0 = arith.constant 0 : index
    %0 = vector.load %arg1[%c0, %c0_0] : memref<8x256xf32, #tpu.memory_space<vmem>>, vector<8x256xf32>
    %c0_1 = arith.constant 0 : index
    %c0_2 = arith.constant 0 : index
    %1 = vector.load %arg2[%c0_1, %c0_2] : memref<256x128xf32, #tpu.memory_space<vmem>>, vector<256x128xf32>
    %cst = arith.constant dense<0.000000e+00> : vector<8x128xf32>
    %2 = tpu.matmul %0, %1, %cst {dimension_numbers = #tpu.dot_dimension_numbers<[1], [0], [0], [1], [0, 0, 1, 1], [], []>} : vector<8x256xf32>, vector<256x128xf32>, vector<8x128xf32> -> vector<8x128xf32>
    %c0_3 = arith.constant 0 : index
    %c0_4 = arith.constant 0 : index
    %3 = vector.load %arg5[%c0_3, %c0_4] : memref<3x128xf32, #tpu.memory_space<vmem>>, vector<3x128xf32>
    %4 = vector.extract_strided_slice %3 {offsets = [0, 0], sizes = [1, 128], strides = [1, 1]} : vector<3x128xf32> to vector<1x128xf32>
    %5 = vector.broadcast %4 : vector<1x128xf32> to vector<8x128xf32>
    %6 = arith.addf %2, %5 : vector<8x128xf32>
    %c0_5 = arith.constant 0 : index
    %c0_6 = arith.constant 0 : index
    %7 = vector.load %arg3[%c0_5, %c0_6] : memref<128x4xf32, #tpu.memory_space<vmem>>, vector<128x4xf32>
    %c0_7 = arith.constant 0 : index
    %c0_8 = arith.constant 0 : index
    %8 = vector.load %arg4[%c0_7, %c0_8] : memref<4x128xf32, #tpu.memory_space<vmem>>, vector<4x128xf32>
    %cst_9 = arith.constant dense<0.000000e+00> : vector<8x4xf32>
    %9 = tpu.matmul %6, %7, %cst_9 {dimension_numbers = #tpu.dot_dimension_numbers<[1], [0], [0], [1], [0, 0, 1, 1], [], []>} : vector<8x128xf32>, vector<128x4xf32>, vector<8x4xf32> -> vector<8x4xf32>
    %10 = arith.mulf %6, %6 : vector<8x128xf32>
    %cst_10 = arith.constant dense<0.000000e+00> : vector<8x4xf32>
    %11 = tpu.matmul %10, %7, %cst_10 {dimension_numbers = #tpu.dot_dimension_numbers<[1], [0], [0], [1], [0, 0, 1, 1], [], []>} : vector<8x128xf32>, vector<128x4xf32>, vector<8x4xf32> -> vector<8x4xf32>
    %12 = arith.mulf %9, %9 : vector<8x4xf32>
    %13 = arith.subf %11, %12 : vector<8x4xf32>
    %cst_11 = arith.constant 0.000000e+00 : f32
    %14 = vector.broadcast %cst_11 : f32 to vector<8x4xf32>
    %15 = arith.maximumf %13, %14 : vector<8x4xf32>
    %cst_12 = arith.constant 9.99999974E-6 : f32
    %16 = vector.broadcast %cst_12 : f32 to vector<8x4xf32>
    %17 = arith.addf %15, %16 : vector<8x4xf32>
    %18 = math.rsqrt %17 : vector<8x4xf32>
    %cst_13 = arith.constant dense<0.000000e+00> : vector<8x128xf32>
    %19 = tpu.matmul %9, %8, %cst_13 {dimension_numbers = #tpu.dot_dimension_numbers<[1], [0], [0], [1], [0, 0, 1, 1], [], []>} : vector<8x4xf32>, vector<4x128xf32>, vector<8x128xf32> -> vector<8x128xf32>
    %cst_14 = arith.constant dense<0.000000e+00> : vector<8x128xf32>
    %20 = tpu.matmul %18, %8, %cst_14 {dimension_numbers = #tpu.dot_dimension_numbers<[1], [0], [0], [1], [0, 0, 1, 1], [], []>} : vector<8x4xf32>, vector<4x128xf32>, vector<8x128xf32> -> vector<8x128xf32>
    %21 = arith.subf %6, %19 : vector<8x128xf32>
    %22 = arith.mulf %21, %20 : vector<8x128xf32>
    %23 = vector.extract_strided_slice %3 {offsets = [1, 0], sizes = [1, 128], strides = [1, 1]} : vector<3x128xf32> to vector<1x128xf32>
    %24 = vector.broadcast %23 : vector<1x128xf32> to vector<8x128xf32>
    %25 = arith.mulf %22, %24 : vector<8x128xf32>
    %26 = vector.extract_strided_slice %3 {offsets = [2, 0], sizes = [1, 128], strides = [1, 1]} : vector<3x128xf32> to vector<1x128xf32>
    %27 = vector.broadcast %26 : vector<1x128xf32> to vector<8x128xf32>
    %28 = arith.addf %25, %27 : vector<8x128xf32>
    %c0_15 = arith.constant 0 : index
    %c0_16 = arith.constant 0 : index
    %29 = vector.load %arg6[%c0_15, %c0_16] : memref<8x128xf32, #tpu.memory_space<vmem>>, vector<8x128xf32>
    tpu.vector_store %arg6[%c0_15, %c0_16], %28 {strides = array<i32>} : memref<8x128xf32, #tpu.memory_space<vmem>>, vector<8x128xf32>,
    return
  }
  func.func @transform_0(%arg0: i32) -> (i32, i32) {
    %c0_i32 = arith.constant 0 : i32
    %c0_i32_0 = arith.constant 0 : i32
    return %arg0, %c0_i32 : i32, i32
  }
  func.func @transform_1(%arg0: i32) -> (i32, i32) {
    %c0_i32 = arith.constant 0 : i32
    %c0_i32_0 = arith.constant 0 : i32
    %c0_i32_1 = arith.constant 0 : i32
    return %c0_i32, %c0_i32_0 : i32, i32
  }
  func.func @transform_2(%arg0: i32) -> (i32, i32) {
    %c0_i32 = arith.constant 0 : i32
    %c0_i32_0 = arith.constant 0 : i32
    %c0_i32_1 = arith.constant 0 : i32
    return %c0_i32, %c0_i32_0 : i32, i32
  }
  func.func @transform_3(%arg0: i32) -> (i32, i32) {
    %c0_i32 = arith.constant 0 : i32
    %c0_i32_0 = arith.constant 0 : i32
    %c0_i32_1 = arith.constant 0 : i32
    return %c0_i32, %c0_i32_0 : i32, i32
  }
  func.func @transform_4(%arg0: i32) -> (i32, i32) {
    %c0_i32 = arith.constant 0 : i32
    %c0_i32_0 = arith.constant 0 : i32
    %c0_i32_1 = arith.constant 0 : i32
    return %c0_i32, %c0_i32_0 : i32, i32
  }
  func.func @transform_5(%arg0: i32) -> (i32, i32) {
    %c0_i32 = arith.constant 0 : i32
    %c0_i32_0 = arith.constant 0 : i32
    return %arg0, %c0_i32 : i32, i32
  }
}

</mosaic_0001>

<llo_original>
// kernel: tpu_custom_call.1
$region0: #{tpu_custom_call.1}
  #allocation0 [shape = 'u32[]', space=smem, size = 0x4, offset = 0x4, fixed_abs, tag = 'smem constant byte address 0x4 - core index']
  #allocation1 [shape = 'u32[144,128]{1,0:T(1,128)}', space=vmem, size = 0x12000, scoped, tag = 'internal scratch']
  %s0 = inlined_call_operand.vmem [shape: f32[8,256], index: 0, kind: input, shape index: {}]
  %s1 = inlined_call_operand.hbm [shape: f32[256,128], index: 1, kind: input, shape index: {}]
  %s2 = inlined_call_operand.vmem [shape: f32[128,4], index: 2, kind: input, shape index: {}]
  %s3 = inlined_call_operand.vmem [shape: f32[4,128], index: 3, kind: input, shape index: {}]
  %s4 = inlined_call_operand.vmem [shape: f32[3,128], index: 4, kind: input, shape index: {}]
  %s5 = inlined_call_operand.hbm [shape: f32[8,128], index: 5, kind: output, shape index: {}]
  %s6 = sld [smem:[#allocation0]]
  $region34: #{tpu_custom_call.1} parent=0
    _
  %s8 = ssub.s32 1, %s6
  %s9 = scalar_select 0, %s8, %s6
  $region1: #{tpu_custom_call.1} parent=0
    #allocation2 [shape = 'u8[131072]{0}', space=vmem, size = 0x20000, scoped, tag = 'input window, operand 1, single buffered']
    #allocation3 [shape = 's32[1]{0}', space=sflag, size = 0x4, scoped, tag = 'scoped memory for tpu_custom_call.1']
    #allocation4 [shape = 's32[1]{0}', space=sflag, size = 0x4, scoped, tag = 'scoped memory for tpu_custom_call.1']
    #allocation5 [shape = 'u8[4096]{0}', space=vmem, size = 0x1000, scoped, tag = 'output window, operand 0, single buffered']
    %10 = vsyncpa [#allocation3], 0
    %11 = vsyncpa [#allocation4], 0
    // Predicated region
    $region2: #{tpu_custom_call.1} parent=1 // pred_check
      _
    $region3: #{tpu_custom_call.1} parent=1 // pred_check_branch
      %13 = sbr.rel (0) target = $region5
    $region4: #{tpu_custom_call.1} parent=1 // pred_region
      _
    $region5: #{tpu_custom_call.1} parent=1 // pred_fallthru
      _
    // Predicated region
    $region6: #{tpu_custom_call.1} parent=1 // pred_check
      _
    $region7: #{tpu_custom_call.1} parent=1 // pred_check_branch
      %15 = sbr.rel (0) target = $region9
    $region8: #{tpu_custom_call.1} parent=1 // pred_region
      %s17 = ssub.s32 4096, 4096
      %18 = vsyncadd [#allocation3], %s17
      %s19 = sshll.u32 [#allocation2], 4
      %s20 = int_to_ptr.vmem [resolvable:$true] %s19
      %25 = dma.hbm_to_vmem [thread:$0]  %s1, 4096, %s20, [#allocation3], 128, 128, 8
    $region9: #{tpu_custom_call.1} parent=1 // pred_fallthru
      _
    // Predicated region
    $region10: #{tpu_custom_call.1} parent=1 // pred_check
      _
    $region11: #{tpu_custom_call.1} parent=1 // pred_check_branch
      %27 = sbr.rel (0) target = $region13
    $region12: #{tpu_custom_call.1} parent=1 // pred_region
      _
    $region13: #{tpu_custom_call.1} parent=1 // pred_fallthru
      _
    // Predicated region
    $region14: #{tpu_custom_call.1} parent=1 // pred_check
      _
    $region15: #{tpu_custom_call.1} parent=1 // pred_check_branch
      %29 = sbr.rel (0) target = $region17
    $region16: #{tpu_custom_call.1} parent=1 // pred_region
      _
    $region17: #{tpu_custom_call.1} parent=1 // pred_fallthru
      _
    // Predicated region
    $region18: #{tpu_custom_call.1} parent=1 // pred_check
      _
    $region19: #{tpu_custom_call.1} parent=1 // pred_check_branch
      %31 = sbr.rel (0) target = $region21
    $region20: #{tpu_custom_call.1} parent=1 // pred_region
      _
    $region21: #{tpu_custom_call.1} parent=1 // pred_fallthru
      _
    // Predicated region
    $region22: #{tpu_custom_call.1} parent=1 // pred_check
      _
    $region23: #{tpu_custom_call.1} parent=1 // pred_check_branch
      %33 = sbr.rel (0) target = $region25
    $region24: #{tpu_custom_call.1} parent=1 // pred_region
      %34 = dma.done [#allocation3], 4096
    $region25: #{tpu_custom_call.1} parent=1 // pred_fallthru
      _
    %v35 = vld [vmem:[%s0] sm:$0xff]
    %v36 = vld [vmem:[%s0 + $0x8] sm:$0xff]
    %v37 = vld [vmem:[#allocation2] sm:$0xff]
    %v38 = vld [vmem:[#allocation2 + $0x8] sm:$0xff]
    %v39 = vld [vmem:[#allocation2 + $0x10] sm:$0xff]
    %v40 = vld [vmem:[#allocation2 + $0x18] sm:$0xff]
    %v41 = vld [vmem:[#allocation2 + $0x20] sm:$0xff]
    %v42 = vld [vmem:[#allocation2 + $0x28] sm:$0xff]
    %v43 = vld [vmem:[#allocation2 + $0x30] sm:$0xff]
    %v44 = vld [vmem:[#allocation2 + $0x38] sm:$0xff]
    %v45 = vld [vmem:[#allocation2 + $0x40] sm:$0xff]
    %v46 = vld [vmem:[#allocation2 + $0x48] sm:$0xff]
    %v47 = vld [vmem:[#allocation2 + $0x50] sm:$0xff]
    %v48 = vld [vmem:[#allocation2 + $0x58] sm:$0xff]
    %v49 = vld [vmem:[#allocation2 + $0x60] sm:$0xff]
    %v50 = vld [vmem:[#allocation2 + $0x68] sm:$0xff]
    %v51 = vld [vmem:[#allocation2 + $0x70] sm:$0xff]
    %v52 = vld [vmem:[#allocation2 + $0x78] sm:$0xff]
    %v53 = vld [vmem:[#allocation2 + $0x80] sm:$0xff]
    %v54 = vld [vmem:[#allocation2 + $0x88] sm:$0xff]
    %v55 = vld [vmem:[#allocation2 + $0x90] sm:$0xff]
    %v56 = vld [vmem:[#allocation2 + $0x98] sm:$0xff]
    %v57 = vld [vmem:[#allocation2 + $0xa0] sm:$0xff]
    %v58 = vld [vmem:[#allocation2 + $0xa8] sm:$0xff]
    %v59 = vld [vmem:[#allocation2 + $0xb0] sm:$0xff]
    %v60 = vld [vmem:[#allocation2 + $0xb8] sm:$0xff]
    %v61 = vld [vmem:[#allocation2 + $0xc0] sm:$0xff]
    %v62 = vld [vmem:[#allocation2 + $0xc8] sm:$0xff]
    %v63 = vld [vmem:[#allocation2 + $0xd0] sm:$0xff]
    %v64 = vld [vmem:[#allocation2 + $0xd8] sm:$0xff]
    %v65 = vld [vmem:[#allocation2 + $0xe0] sm:$0xff]
    %v66 = vld [vmem:[#allocation2 + $0xe8] sm:$0xff]
    %v67 = vld [vmem:[#allocation2 + $0xf0] sm:$0xff]
    %v68 = vld [vmem:[#allocation2 + $0xf8] sm:$0xff]
    %v69 = vld [vmem:[%s4] sm:$0x7]
    %v70 = vlaneseq
    %v71 = vshrl.u32 %v70, 7
    %v72 = vsub.s32 0, %v71
    %v73 = vrot.slane %v69, %v72
    %74 = vmatprep.subr.mxu0 0.0
    %75 = vmatpush1.msra.mxu0 %v37
    %76 = vmatprep.subr.mxu0 0.0
    %77 = vmatpush1.msra.mxu0 %v38
    %78 = vmatprep.subr.mxu0 0.0
    %79 = vmatpush1.msra.mxu0 %v39
    %80 = vmatprep.subr.mxu0 0.0
    %81 = vmatpush1.msra.mxu0 %v40
    %82 = vmatprep.subr.mxu0 0.0
    %83 = vmatpush1.msra.mxu0 %v41
    %84 = vmatprep.subr.mxu0 0.0
    %85 = vmatpush1.msra.mxu0 %v42
    %86 = vmatprep.subr.mxu0 0.0
    %87 = vmatpush1.msra.mxu0 %v43
    %88 = vmatprep.subr.mxu0 0.0
    %89 = vmatpush1.msra.mxu0 %v44
    %90 = vmatprep.subr.mxu0 0.0
    %91 = vmatpush1.msra.mxu0 %v45
    %92 = vmatprep.subr.mxu0 0.0
    %93 = vmatpush1.msra.mxu0 %v46
    %94 = vmatprep.subr.mxu0 0.0
    %95 = vmatpush1.msra.mxu0 %v47
    %96 = vmatprep.subr.mxu0 0.0
    %97 = vmatpush1.msra.mxu0 %v48
    %98 = vmatprep.subr.mxu0 0.0
    %99 = vmatpush1.msra.mxu0 %v49
    %100 = vmatprep.subr.mxu0 0.0
    %101 = vmatpush1.msra.mxu0 %v50
    %102 = vmatprep.subr.mxu0 0.0
    %103 = vmatpush1.msra.mxu0 %v51
    %104 = vmatprep.subr.mxu0 0.0
    %105 = vmatpush1.msra.mxu0 %v52
    %106 = vmatprep.subr.mxu0 0.0
    %107 = vmatpush1.msra.mxu0 %v53
    %108 = vmatprep.subr.mxu0 0.0
    %109 = vmatpush1.msra.mxu0 %v54
    %110 = vmatprep.subr.mxu0 0.0
    %111 = vmatpush1.msra.mxu0 %v55
    %112 = vmatprep.subr.mxu0 0.0
    %113 = vmatpush1.msra.mxu0 %v56
    %114 = vmatprep.subr.mxu0 0.0
    %115 = vmatpush1.msra.mxu0 %v57
    %116 = vmatprep.subr.mxu0 0.0
    %117 = vmatpush1.msra.mxu0 %v58
    %118 = vmatprep.subr.mxu0 0.0
    %119 = vmatpush1.msra.mxu0 %v59
    %120 = vmatprep.subr.mxu0 0.0
    %121 = vmatpush1.msra.mxu0 %v60
    %122 = vmatprep.subr.mxu0 0.0
    %123 = vmatpush1.msra.mxu0 %v61
    %124 = vmatprep.subr.mxu0 0.0
    %125 = vmatpush1.msra.mxu0 %v62
    %126 = vmatprep.subr.mxu0 0.0
    %127 = vmatpush1.msra.mxu0 %v63
    %128 = vmatprep.subr.mxu0 0.0
    %129 = vmatpush1.msra.mxu0 %v64
    %130 = vmatprep.subr.mxu0 0.0
    %131 = vmatpush1.msra.mxu0 %v65
    %132 = vmatprep.subr.mxu0 0.0
    %133 = vmatpush1.msra.mxu0 %v66
    %134 = vmatprep.subr.mxu0 0.0
    %135 = vmatpush1.msra.mxu0 %v67
    %136 = vmatprep.subr.mxu0 0.0
    %137 = vmatpush1.msra.mxu0 %v68
    %138 = vmatprep.mubr.f32.mxu0 %v36
    %139 = vmatmul.mubr.f32.gmra.mrb[0].mxu0 %v35
    %v140 = vpop.f32.mrb[0].mxu0
    %v141 = vadd.f32 %v73, %v140
    %v142 = vpop.f32.mrb[0].mxu0
    %143 = vdwg.mxu0
    %v144 = vld [vmem:[%s2] sm:$0xff]
    %v145 = vld [vmem:[%s2 + $0x8] sm:$0xff]
    %v146 = vld [vmem:[%s2 + $0x10] sm:$0xff]
    %v147 = vld [vmem:[%s2 + $0x18] sm:$0xff]
    %v148 = vld [vmem:[%s2 + $0x20] sm:$0xff]
    %v149 = vld [vmem:[%s2 + $0x28] sm:$0xff]
    %v150 = vld [vmem:[%s2 + $0x30] sm:$0xff]
    %v151 = vld [vmem:[%s2 + $0x38] sm:$0xff]
    %v152 = vld [vmem:[%s2 + $0x40] sm:$0xff]
    %v153 = vld [vmem:[%s2 + $0x48] sm:$0xff]
    %v154 = vld [vmem:[%s2 + $0x50] sm:$0xff]
    %v155 = vld [vmem:[%s2 + $0x58] sm:$0xff]
    %v156 = vld [vmem:[%s2 + $0x60] sm:$0xff]
    %v157 = vld [vmem:[%s2 + $0x68] sm:$0xff]
    %v158 = vld [vmem:[%s2 + $0x70] sm:$0xff]
    %v159 = vld [vmem:[%s2 + $0x78] sm:$0xff]
    %v160 = vld [vmem:[%s3] sm:$0xf]
    %161 = vmatprep.subr.mxu0 0.0
    %162 = vmatpush1.msra.mxu0 %v144
    %163 = vmatprep.subr.mxu0 0.0
    %164 = vmatpush1.msra.mxu0 %v145
    %165 = vmatprep.subr.mxu0 0.0
    %166 = vmatpush1.msra.mxu0 %v146
    %167 = vmatprep.subr.mxu0 0.0
    %168 = vmatpush1.msra.mxu0 %v147
    %169 = vmatprep.subr.mxu0 0.0
    %170 = vmatpush1.msra.mxu0 %v148
    %171 = vmatprep.subr.mxu0 0.0
    %172 = vmatpush1.msra.mxu0 %v149
    %173 = vmatprep.subr.mxu0 0.0
    %174 = vmatpush1.msra.mxu0 %v150
    %175 = vmatprep.subr.mxu0 0.0
    %176 = vmatpush1.msra.mxu0 %v151
    %177 = vmatprep.subr.mxu0 0.0
    %178 = vmatpush1.msra.mxu0 %v152
    %179 = vmatprep.subr.mxu0 0.0
    %180 = vmatpush1.msra.mxu0 %v153
    %181 = vmatprep.subr.mxu0 0.0
    %182 = vmatpush1.msra.mxu0 %v154
    %183 = vmatprep.subr.mxu0 0.0
    %184 = vmatpush1.msra.mxu0 %v155
    %185 = vmatprep.subr.mxu0 0.0
    %186 = vmatpush1.msra.mxu0 %v156
    %187 = vmatprep.subr.mxu0 0.0
    %188 = vmatpush1.msra.mxu0 %v157
    %189 = vmatprep.subr.mxu0 0.0
    %190 = vmatpush1.msra.mxu0 %v158
    %191 = vmatprep.subr.mxu0 0.0
    %192 = vmatpush1.msra.mxu0 %v159
    %193 = vmatprep.subr.mxu0 0.0
    %194 = vmatpush1.msra.mxu0 0.0
    %195 = vmatprep.subr.mxu0 0.0
    %196 = vmatpush1.msra.mxu0 0.0
    %197 = vmatprep.subr.mxu0 0.0
    %198 = vmatpush1.msra.mxu0 0.0
    %199 = vmatprep.subr.mxu0 0.0
    %200 = vmatpush1.msra.mxu0 0.0
    %201 = vmatprep.subr.mxu0 0.0
    %202 = vmatpush1.msra.mxu0 0.0
    %203 = vmatprep.subr.mxu0 0.0
    %204 = vmatpush1.msra.mxu0 0.0
    %205 = vmatprep.subr.mxu0 0.0
    %206 = vmatpush1.msra.mxu0 0.0
    %207 = vmatprep.subr.mxu0 0.0
    %208 = vmatpush1.msra.mxu0 0.0
    %209 = vmatprep.subr.mxu0 0.0
    %210 = vmatpush1.msra.mxu0 0.0
    %211 = vmatprep.subr.mxu0 0.0
    %212 = vmatpush1.msra.mxu0 0.0
    %213 = vmatprep.subr.mxu0 0.0
    %214 = vmatpush1.msra.mxu0 0.0
    %215 = vmatprep.subr.mxu0 0.0
    %216 = vmatpush1.msra.mxu0 0.0
    %217 = vmatprep.subr.mxu0 0.0
    %218 = vmatpush1.msra.mxu0 0.0
    %219 = vmatprep.subr.mxu0 0.0
    %220 = vmatpush1.msra.mxu0 0.0
    %221 = vmatprep.subr.mxu0 0.0
    %222 = vmatpush1.msra.mxu0 0.0
    %223 = vmatprep.subr.mxu0 0.0
    %224 = vmatpush1.msra.mxu0 0.0
    %225 = vmatprep.mubr.f32.mxu0 0.0
    %226 = vmatmul.mubr.f32.gmra.mrb[0].mxu0 %v141
    %v227 = vpop.f32.mrb[0].mxu0
    %v228 = vadd.f32 0.0, %v227
    %v229 = vpop.f32.mrb[0].mxu0
    %230 = vdwg.mxu0
    %v231 = vmul.f32 %v141, %v141
    %232 = vmatprep.subr.mxu0 0.0
    %233 = vmatpush1.msra.mxu0 %v144
    %234 = vmatprep.subr.mxu0 0.0
    %235 = vmatpush1.msra.mxu0 %v145
    %236 = vmatprep.subr.mxu0 0.0
    %237 = vmatpush1.msra.mxu0 %v146
    %238 = vmatprep.subr.mxu0 0.0
    %239 = vmatpush1.msra.mxu0 %v147
    %240 = vmatprep.subr.mxu0 0.0
    %241 = vmatpush1.msra.mxu0 %v148
    %242 = vmatprep.subr.mxu0 0.0
    %243 = vmatpush1.msra.mxu0 %v149
    %244 = vmatprep.subr.mxu0 0.0
    %245 = vmatpush1.msra.mxu0 %v150
    %246 = vmatprep.subr.mxu0 0.0
    %247 = vmatpush1.msra.mxu0 %v151
    %248 = vmatprep.subr.mxu0 0.0
    %249 = vmatpush1.msra.mxu0 %v152
    %250 = vmatprep.subr.mxu0 0.0
    %251 = vmatpush1.msra.mxu0 %v153
    %252 = vmatprep.subr.mxu0 0.0
    %253 = vmatpush1.msra.mxu0 %v154
    %254 = vmatprep.subr.mxu0 0.0
    %255 = vmatpush1.msra.mxu0 %v155
    %256 = vmatprep.subr.mxu0 0.0
    %257 = vmatpush1.msra.mxu0 %v156
    %258 = vmatprep.subr.mxu0 0.0
    %259 = vmatpush1.msra.mxu0 %v157
    %260 = vmatprep.subr.mxu0 0.0
    %261 = vmatpush1.msra.mxu0 %v158
    %262 = vmatprep.subr.mxu0 0.0
    %263 = vmatpush1.msra.mxu0 %v159
    %264 = vmatprep.subr.mxu0 0.0
    %265 = vmatpush1.msra.mxu0 0.0
    %266 = vmatprep.subr.mxu0 0.0
    %267 = vmatpush1.msra.mxu0 0.0
    %268 = vmatprep.subr.mxu0 0.0
    %269 = vmatpush1.msra.mxu0 0.0
    %270 = vmatprep.subr.mxu0 0.0
    %271 = vmatpush1.msra.mxu0 0.0
    %272 = vmatprep.subr.mxu0 0.0
    %273 = vmatpush1.msra.mxu0 0.0
    %274 = vmatprep.subr.mxu0 0.0
    %275 = vmatpush1.msra.mxu0 0.0
    %276 = vmatprep.subr.mxu0 0.0
    %277 = vmatpush1.msra.mxu0 0.0
    %278 = vmatprep.subr.mxu0 0.0
    %279 = vmatpush1.msra.mxu0 0.0
    %280 = vmatprep.subr.mxu0 0.0
    %281 = vmatpush1.msra.mxu0 0.0
    %282 = vmatprep.subr.mxu0 0.0
    %283 = vmatpush1.msra.mxu0 0.0
    %284 = vmatprep.subr.mxu0 0.0
    %285 = vmatpush1.msra.mxu0 0.0
    %286 = vmatprep.subr.mxu0 0.0
    %287 = vmatpush1.msra.mxu0 0.0
    %288 = vmatprep.subr.mxu0 0.0
    %289 = vmatpush1.msra.mxu0 0.0
    %290 = vmatprep.subr.mxu0 0.0
    %291 = vmatpush1.msra.mxu0 0.0
    %292 = vmatprep.subr.mxu0 0.0
    %293 = vmatpush1.msra.mxu0 0.0
    %294 = vmatprep.subr.mxu0 0.0
    %295 = vmatpush1.msra.mxu0 0.0
    %296 = vmatprep.mubr.f32.mxu0 0.0
    %297 = vmatmul.mubr.f32.gmra.mrb[0].mxu0 %v231
    %v298 = vpop.f32.mrb[0].mxu0
    %v299 = vadd.f32 0.0, %v298
    %v300 = vpop.f32.mrb[0].mxu0
    %301 = vdwg.mxu0
    %v302 = vmul.f32 %v228, %v228
    %v303 = vsub.f32 %v299, %v302
    %v304 = vmax.f32 %v303, 0.0
    %v305 = vadd.f32 %v304, 1e-05
    %v306 = vrsqrt.pop %v305
    %vm307 = vcmask 31744
    %v309 = vsel %vm307, %v228, 0
    %vm311 = vcmask 1043456
    %v313 = vsel %vm311, %v160, 0
    %315 = vmatprep.subr.mxu0 0.0
    %316 = vmatpush1.msra.mxu0 %v313
    %317 = vmatprep.subr.mxu0 0.0
    %318 = vmatpush1.msra.mxu0 0.0
    %319 = vmatprep.subr.mxu0 0.0
    %320 = vmatpush1.msra.mxu0 0.0
    %321 = vmatprep.subr.mxu0 0.0
    %322 = vmatpush1.msra.mxu0 0.0
    %323 = vmatprep.subr.mxu0 0.0
    %324 = vmatpush1.msra.mxu0 0.0
    %325 = vmatprep.subr.mxu0 0.0
    %326 = vmatpush1.msra.mxu0 0.0
    %327 = vmatprep.subr.mxu0 0.0
    %328 = vmatpush1.msra.mxu0 0.0
    %329 = vmatprep.subr.mxu0 0.0
    %330 = vmatpush1.msra.mxu0 0.0
    %331 = vmatprep.subr.mxu0 0.0
    %332 = vmatpush1.msra.mxu0 0.0
    %333 = vmatprep.subr.mxu0 0.0
    %334 = vmatpush1.msra.mxu0 0.0
    %335 = vmatprep.subr.mxu0 0.0
    %336 = vmatpush1.msra.mxu0 0.0
    %337 = vmatprep.subr.mxu0 0.0
    %338 = vmatpush1.msra.mxu0 0.0
    %339 = vmatprep.subr.mxu0 0.0
    %340 = vmatpush1.msra.mxu0 0.0
    %341 = vmatprep.subr.mxu0 0.0
    %342 = vmatpush1.msra.mxu0 0.0
    %343 = vmatprep.subr.mxu0 0.0
    %344 = vmatpush1.msra.mxu0 0.0
    %345 = vmatprep.subr.mxu0 0.0
    %346 = vmatpush1.msra.mxu0 0.0
    %347 = vmatprep.subr.mxu0 0.0
    %348 = vmatpush1.msra.mxu0 0.0
    %349 = vmatprep.subr.mxu0 0.0
    %350 = vmatpush1.msra.mxu0 0.0
    %351 = vmatprep.subr.mxu0 0.0
    %352 = vmatpush1.msra.mxu0 0.0
    %353 = vmatprep.subr.mxu0 0.0
    %354 = vmatpush1.msra.mxu0 0.0
    %355 = vmatprep.subr.mxu0 0.0
    %356 = vmatpush1.msra.mxu0 0.0
    %357 = vmatprep.subr.mxu0 0.0
    %358 = vmatpush1.msra.mxu0 0.0
    %359 = vmatprep.subr.mxu0 0.0
    %360 = vmatpush1.msra.mxu0 0.0
    %361 = vmatprep.subr.mxu0 0.0
    %362 = vmatpush1.msra.mxu0 0.0
    %363 = vmatprep.subr.mxu0 0.0
    %364 = vmatpush1.msra.mxu0 0.0
    %365 = vmatprep.subr.mxu0 0.0
    %366 = vmatpush1.msra.mxu0 0.0
    %367 = vmatprep.subr.mxu0 0.0
    %368 = vmatpush1.msra.mxu0 0.0
    %369 = vmatprep.subr.mxu0 0.0
    %370 = vmatpush1.msra.mxu0 0.0
    %371 = vmatprep.subr.mxu0 0.0
    %372 = vmatpush1.msra.mxu0 0.0
    %373 = vmatprep.subr.mxu0 0.0
    %374 = vmatpush1.msra.mxu0 0.0
    %375 = vmatprep.subr.mxu0 0.0
    %376 = vmatpush1.msra.mxu0 0.0
    %377 = vmatprep.subr.mxu0 0.0
    %378 = vmatpush1.msra.mxu0 0.0
    %379 = vmatprep.mubr.f32.mxu0 0.0
    %380 = vmatmul.mubr.f32.gmra.mrb[0].mxu0 %v309
    %v381 = vpop.f32.mrb[0].mxu0
    %v382 = vadd.f32 0.0, %v381
    %v383 = vpop.f32.mrb[0].mxu0
    %384 = vdwg.mxu0
    %v386 = vsel %vm307, %v306, 0
    %388 = vmatprep.subr.mxu0 0.0
    %389 = vmatpush1.msra.mxu0 %v313
    %390 = vmatprep.subr.mxu0 0.0
    %391 = vmatpush1.msra.mxu0 0.0
    %392 = vmatprep.subr.mxu0 0.0
    %393 = vmatpush1.msra.mxu0 0.0
    %394 = vmatprep.subr.mxu0 0.0
    %395 = vmatpush1.msra.mxu0 0.0
    %396 = vmatprep.subr.mxu0 0.0
    %397 = vmatpush1.msra.mxu0 0.0
    %398 = vmatprep.subr.mxu0 0.0
    %399 = vmatpush1.msra.mxu0 0.0
    %400 = vmatprep.subr.mxu0 0.0
    %401 = vmatpush1.msra.mxu0 0.0
    %402 = vmatprep.subr.mxu0 0.0
    %403 = vmatpush1.msra.mxu0 0.0
    %404 = vmatprep.subr.mxu0 0.0
    %405 = vmatpush1.msra.mxu0 0.0
    %406 = vmatprep.subr.mxu0 0.0
    %407 = vmatpush1.msra.mxu0 0.0
    %408 = vmatprep.subr.mxu0 0.0
    %409 = vmatpush1.msra.mxu0 0.0
    %410 = vmatprep.subr.mxu0 0.0
    %411 = vmatpush1.msra.mxu0 0.0
    %412 = vmatprep.subr.mxu0 0.0
    %413 = vmatpush1.msra.mxu0 0.0
    %414 = vmatprep.subr.mxu0 0.0
    %415 = vmatpush1.msra.mxu0 0.0
    %416 = vmatprep.subr.mxu0 0.0
    %417 = vmatpush1.msra.mxu0 0.0
    %418 = vmatprep.subr.mxu0 0.0
    %419 = vmatpush1.msra.mxu0 0.0
    %420 = vmatprep.subr.mxu0 0.0
    %421 = vmatpush1.msra.mxu0 0.0
    %422 = vmatprep.subr.mxu0 0.0
    %423 = vmatpush1.msra.mxu0 0.0
    %424 = vmatprep.subr.mxu0 0.0
    %425 = vmatpush1.msra.mxu0 0.0
    %426 = vmatprep.subr.mxu0 0.0
    %427 = vmatpush1.msra.mxu0 0.0
    %428 = vmatprep.subr.mxu0 0.0
    %429 = vmatpush1.msra.mxu0 0.0
    %430 = vmatprep.subr.mxu0 0.0
    %431 = vmatpush1.msra.mxu0 0.0
    %432 = vmatprep.subr.mxu0 0.0
    %433 = vmatpush1.msra.mxu0 0.0
    %434 = vmatprep.subr.mxu0 0.0
    %435 = vmatpush1.msra.mxu0 0.0
    %436 = vmatprep.subr.mxu0 0.0
    %437 = vmatpush1.msra.mxu0 0.0
    %438 = vmatprep.subr.mxu0 0.0
    %439 = vmatpush1.msra.mxu0 0.0
    %440 = vmatprep.subr.mxu0 0.0
    %441 = vmatpush1.msra.mxu0 0.0
    %442 = vmatprep.subr.mxu0 0.0
    %443 = vmatpush1.msra.mxu0 0.0
    %444 = vmatprep.subr.mxu0 0.0
    %445 = vmatpush1.msra.mxu0 0.0
    %446 = vmatprep.subr.mxu0 0.0
    %447 = vmatpush1.msra.mxu0 0.0
    %448 = vmatprep.subr.mxu0 0.0
    %449 = vmatpush1.msra.mxu0 0.0
    %450 = vmatprep.subr.mxu0 0.0
    %451 = vmatpush1.msra.mxu0 0.0
    %452 = vmatprep.mubr.f32.mxu0 0.0
    %453 = vmatmul.mubr.f32.gmra.mrb[0].mxu0 %v386
    %v454 = vpop.f32.mrb[0].mxu0
    %v455 = vadd.f32 0.0, %v454
    %v456 = vpop.f32.mrb[0].mxu0
    %457 = vdwg.mxu0
    %v458 = vsub.f32 %v141, %v382
    %v459 = vmul.f32 %v458, %v455
    %v460 = vlaneseq
    %v461 = vshrl.u32 %v460, 7
    %v462 = vsub.s32 1, %v461
    %v463 = vrot.slane %v69, %v462
    %v464 = vmul.f32 %v459, %v463
    %v465 = vlaneseq
    %v466 = vshrl.u32 %v465, 7
    %v467 = vsub.s32 2, %v466
    %v468 = vrot.slane %v69, %v467
    %v469 = vadd.f32 %v464, %v468
    %470 = vst [vmem:[#allocation5] sm:$0xff] %v469
    // Predicated region
    $region26: #{tpu_custom_call.1} parent=1 // pred_check
      _
    $region27: #{tpu_custom_call.1} parent=1 // pred_check_branch
      %472 = sbr.rel (0) target = $region29
    $region28: #{tpu_custom_call.1} parent=1 // pred_region
      %s474 = ssub.s32 128, 128
      %475 = vsyncadd [#allocation4], %s474
      %s477 = sshll.u32 [#allocation5], 4
      %s478 = int_to_ptr.vmem [resolvable:$true] %s477
      %480 = dma.vmem_to_hbm [thread:$0]  %s478, 128, %s5, [#allocation4]
    $region29: #{tpu_custom_call.1} parent=1 // pred_fallthru
      _
    // Predicated region
    $region30: #{tpu_custom_call.1} parent=1 // pred_check
      _
    $region31: #{tpu_custom_call.1} parent=1 // pred_check_branch
      %482 = sbr.rel (0) target = $region33
    $region32: #{tpu_custom_call.1} parent=1 // pred_region
      %483 = dma.done [#allocation4], 128
    $region33: #{tpu_custom_call.1} parent=1 // pred_fallthru
      _
    %484 = vsyncpa [#allocation3], 1
    %485 = vsyncpa [#allocation4], 1

</llo_original>
